<compile_context>
chip_gen: v6e
topology: v6e:2x2x1
jax: 0.10.0
libtpu: 0.0.40
codegen_flags: <defaults>
</compile_context>

<pallas_src>
import functools

import numpy as np
import jax
import jax.numpy as jnp
from jax.experimental import pallas as pl
from jax.experimental.pallas import tpu as pltpu


VPAD = 128  # lane-dense width for the value-head output block


def _round_up(x, m):
    return ((x + m - 1) // m) * m


# ---------------------------------------------------------------------------
# Kernel 1: shared encoder + policy/value heads (single block, runs once)
# ---------------------------------------------------------------------------
def _encoder_heads_kernel(
    obs_ref,    # [B, OBS]      f32
    w1_ref,     # [OBS, H]      bf16
    b1_ref,     # [1, H]        f32
    w2_ref,     # [H, H]        bf16
    b2_ref,     # [1, H]        f32
    wp_ref,     # [H, DWc]      bf16 (policy head, zero-padded DW..DWc)
    bp_ref,     # [1, DWc]      f32
    wv_ref,     # [H, VPAD]     bf16 (value column in lane 0)
    bv_ref,     # [1, VPAD]     f32
    q_ref,      # [B, DWc]      bf16 out (policy query)
    vals_ref,   # [B, VPAD]     f32 out (value in lane 0, lane-dense store)
):
    obs = obs_ref[...].astype(jnp.bfloat16)
    h1 = jnp.dot(obs, w1_ref[...], preferred_element_type=jnp.float32) + b1_ref[...]
    h1 = jnp.maximum(h1, 0.0)
    h = jnp.dot(h1.astype(jnp.bfloat16), w2_ref[...],
                preferred_element_type=jnp.float32) + b2_ref[...]
    h = jnp.maximum(h, 0.0)
    hb = h.astype(jnp.bfloat16)
    q = jnp.dot(hb, wp_ref[...], preferred_element_type=jnp.float32) + bp_ref[...]
    q_ref[...] = q.astype(jnp.bfloat16)
    vals_ref[...] = jnp.dot(hb, wv_ref[...],
                            preferred_element_type=jnp.float32) + bv_ref[...]


# ---------------------------------------------------------------------------
# Kernel 2: vocab-tiled logits streaming (HBM-bound; grid is "parallel")
# ---------------------------------------------------------------------------
def _logits_kernel(
    q_ref,       # [B, DWc]       bf16 (resident across tiles)
    we_t_ref,    # [DWc, tile_v]  bf16 (transposed word-encoding vocab tile)
    mask_ref,    # [B, tile_v]    int8 (0 = valid, 1 = invalid)
    logits_ref,  # [B, tile_v]    f32 out
):
    logits = jnp.dot(q_ref[...], we_t_ref[...], preferred_element_type=jnp.float32)
    logits_ref[...] = jnp.where(mask_ref[...] == 0, logits, -jnp.inf)


# ---------------------------------------------------------------------------
# Wrapper: packing (layout glue) + two pallas_calls
# ---------------------------------------------------------------------------
def wordle_actor_critic_forward(obs, params, word_encodings, mask_i8, *, tile_v=2048):
    """obs [B,OBS] f32, word_encodings [V,DW] f32, mask_i8 [B,V] int8 (0=valid).
    Returns (masked_logits [B,V] f32, values [B] f32)."""
    B, OBS = obs.shape
    V, DW = word_encodings.shape
    H = params["w1"].shape[1]

    DWc = _round_up(DW, 16)                 # bf16 sublane tile; NOT padded to 128
    tile_v = min(tile_v, _round_up(V, 128))  # don't over-pad small vocabularies
    Vp = _round_up(V, tile_v)
    n_tiles = Vp // tile_v

    # ---- bf16 weights (halved HBM, full MXU rate), f32 biases ----
    w1 = params["w1"].astype(jnp.bfloat16)
    w2 = params["w2"].astype(jnp.bfloat16)
    b1 = params["b1"].astype(jnp.float32)
    b2 = params["b2"].astype(jnp.float32)
    wp = jnp.zeros((H, DWc), jnp.float32).at[:, :DW].set(params["wp"]).astype(jnp.bfloat16)
    bp = jnp.zeros((1, DWc), jnp.float32).at[:, :DW].set(params["bp"])
    wv = jnp.zeros((H, VPAD), jnp.float32).at[:, 0].set(params["wv"][:, 0]).astype(jnp.bfloat16)
    bv = jnp.zeros((1, VPAD), jnp.float32).at[:, 0].set(params["bv"][:, 0])

    # Transposed word encodings [DWc, Vp] bf16 (sublane=DWc, lane=vocab);
    # pad rows (DW..DWc) are zero, pad vocab columns are masked invalid.
    we_t = (jnp.zeros((DWc, Vp), jnp.float32)
            .at[:DW, :V].set(word_encodings.T).astype(jnp.bfloat16))

    # Validity mask padded to Vp (padding columns marked invalid).
    mask_p = jnp.ones((B, Vp), jnp.int8).at[:, :V].set(mask_i8)

    # ---- call 1: encoder + heads (tiny, single block, whole arrays in VMEM) ----
    vmem = pl.BlockSpec(memory_space=pltpu.MemorySpace.VMEM)
    query, values_p = pl.pallas_call(
        _encoder_heads_kernel,
        out_shape=(jax.ShapeDtypeStruct((B, DWc), jnp.bfloat16),
                   jax.ShapeDtypeStruct((B, VPAD), jnp.float32)),
        in_specs=[vmem] * 9,
        out_specs=(vmem, vmem),
    )(obs, w1, b1, w2, b2, wp, bp, wv, bv)

    # ---- call 2: streaming vocab logits, software-pipelined over vocab tiles ----
    flops = 2 * B * Vp * DWc
    bytes_accessed = (
        DWc * Vp * 2        # word encodings (dominant stream)
        + B * Vp * 1        # int8 mask
        + B * Vp * 4        # f32 logits writeback
        + B * DWc * 2       # query
    )

    logits_p = pl.pallas_call(
        _logits_kernel,
        out_shape=jax.ShapeDtypeStruct((B, Vp), jnp.float32),
        grid_spec=pltpu.PrefetchScalarGridSpec(
            num_scalar_prefetch=0,
            grid=(n_tiles,),
            in_specs=[
                pl.BlockSpec((B, DWc), lambda j: (0, 0)),       # query (resident)
                pl.BlockSpec((DWc, tile_v), lambda j: (0, j)),  # wordenc vocab tile
                pl.BlockSpec((B, tile_v), lambda j: (0, j)),    # mask vocab tile
            ],
            out_specs=pl.BlockSpec((B, tile_v), lambda j: (0, j)),
        ),
        compiler_params=pltpu.CompilerParams(
            # No cross-tile carry -> tiles are independent; shard across TCs.
            dimension_semantics=("parallel",),
        ),
        cost_estimate=pl.CostEstimate(
            flops=int(flops), transcendentals=0, bytes_accessed=int(bytes_accessed)
        ),
    )(query, we_t, mask_p)

    return logits_p[:, :V], values_p[:, 0]


# ---------------------------------------------------------------------------
# Deterministic parameters / ragged valid-index mask (host-side glue)
# ---------------------------------------------------------------------------
def init_params(key, obs_dim, hidden, d_word):
    ks = jax.random.split(key, 8)
    scale = 0.1
    return {
        "w1": scale * jax.random.normal(ks[0], (obs_dim, hidden), jnp.float32),
        "b1": scale * jax.random.normal(ks[1], (1, hidden), jnp.float32),
        "w2": scale * jax.random.normal(ks[2], (hidden, hidden), jnp.float32),
        "b2": scale * jax.random.normal(ks[3], (1, hidden), jnp.float32),
        "wp": scale * jax.random.normal(ks[4], (hidden, d_word), jnp.float32),
        "bp": scale * jax.random.normal(ks[5], (1, d_word), jnp.float32),
        "wv": scale * jax.random.normal(ks[6], (hidden, 1), jnp.float32),
        "bv": scale * jax.random.normal(ks[7], (1, 1), jnp.float32),
    }


def build_mask_int8(valid_indices_batch, batch_size, vocab_size):
    # Compact int8 validity mask (0 = valid, 1 = invalid); ragged lists ->
    # padded numpy index table -> vectorized membership test (no traced scatters).
    kmax = max(max((len(v) for v in valid_indices_batch), default=1), 1)
    idx = np.full((batch_size, kmax), -1, np.int32)
    for i, v in enumerate(valid_indices_batch):
        idx[i, : len(v)] = np.asarray(v, np.int32)
    idx = jnp.asarray(idx)
    cols = jnp.arange(vocab_size, dtype=jnp.int32)
    valid = jnp.any(idx[:, :, None] == cols[None, None, :], axis=1)
    return jnp.where(valid, 0, 1).astype(jnp.int8)


if __name__ == "__main__":
    # Small demo shapes; V not a tile multiple and tile_v < Vp so both padding
    # and the multi-tile vocab grid are exercised.
    B, OBS, H, DW, V = 8, 32, 32, 32, 500

    key = jax.random.PRNGKey(0)
    k_obs, k_words, k_params = jax.random.split(key, 3)

    obs = jax.random.normal(k_obs, (B, OBS), jnp.float32)
    word_encodings = jax.random.normal(k_words, (V, DW), jnp.float32)
    params = init_params(k_params, OBS, H, DW)

    # Deterministic variable-length valid word index lists per sample.
    valid_indices_batch = [list(range(i, min(V, i + 37 * (i + 1)), 3)) for i in range(B)]
    mask_i8 = build_mask_int8(valid_indices_batch, B, V)

    masked_logits, values = wordle_actor_critic_forward(
        obs, params, word_encodings, mask_i8, tile_v=256
    )
    jax.block_until_ready((masked_logits, values))

    # ---- pure-JAX reference mirroring the kernel numerics (bf16 W, f32 acc) ----
    c = lambda x: x.astype(jnp.bfloat16)
    h1 = jnp.maximum(
        jnp.dot(c(obs), c(params["w1"]), preferred_element_type=jnp.float32)
        + params["b1"], 0.0)
    h = jnp.maximum(
        jnp.dot(c(h1), c(params["w2"]), preferred_element_type=jnp.float32)
        + params["b2"], 0.0)
    query = jnp.dot(c(h), c(params["wp"]), preferred_element_type=jnp.float32) + params["bp"]
    raw_logits = jax.lax.dot_general(
        c(query), c(word_encodings),
        dimension_numbers=(((1,), (1,)), ((), ())),
        preferred_element_type=jnp.float32)
    invalid = mask_i8 != 0
    ref_logits = jnp.where(invalid, -jnp.inf, raw_logits)
    ref_values = (
        jnp.dot(c(h), c(params["wv"]), preferred_element_type=jnp.float32)
        + params["bv"])[:, 0]

    assert masked_logits.shape == (B, V) and values.shape == (B,)
    finite = jnp.isfinite(ref_logits)
    assert jnp.allclose(
        jnp.where(finite, masked_logits, 0.0),
        jnp.where(finite, ref_logits, 0.0),
        atol=2e-3, rtol=2e-3,
    )
    assert bool(jnp.all(jnp.isneginf(masked_logits) == jnp.isneginf(ref_logits)))
    assert bool(jnp.all(jnp.isfinite(values)))
    assert jnp.allclose(values, ref_values, atol=2e-3, rtol=2e-3)

    print("KERNEL_OK")
</pallas_src>

<mosaic_0001>
module attributes {stable_mosaic.version = 11 : i64} {
  func.func @_encoder_heads_kernel(%arg0: memref<8x32xf32, #tpu.memory_space<vmem>>, %arg1: memref<32x32xbf16, #tpu.memory_space<vmem>>, %arg2: memref<1x32xf32, #tpu.memory_space<vmem>>, %arg3: memref<32x32xbf16, #tpu.memory_space<vmem>>, %arg4: memref<1x32xf32, #tpu.memory_space<vmem>>, %arg5: memref<32x32xbf16, #tpu.memory_space<vmem>>, %arg6: memref<1x32xf32, #tpu.memory_space<vmem>>, %arg7: memref<32x128xbf16, #tpu.memory_space<vmem>>, %arg8: memref<1x128xf32, #tpu.memory_space<vmem>>, %arg9: memref<8x32xbf16, #tpu.memory_space<vmem>>, %arg10: memref<8x128xf32, #tpu.memory_space<vmem>>) attributes {dimension_semantics = [], scalar_prefetch = 0 : i64, scratch_operands = 0 : i64, tpu.core_type = #tpu.core_type<tc>} {
    %c0 = arith.constant 0 : index
    %c0_0 = arith.constant 0 : index
    %0 = vector.load %arg0[%c0, %c0_0] : memref<8x32xf32, #tpu.memory_space<vmem>>, vector<8x32xf32>
    %1 = arith.truncf %0 : vector<8x32xf32> to vector<8x32xbf16>
    %c0_1 = arith.constant 0 : index
    %c0_2 = arith.constant 0 : index
    %2 = vector.load %arg1[%c0_1, %c0_2] : memref<32x32xbf16, #tpu.memory_space<vmem>>, vector<32x32xbf16>
    %cst = arith.constant dense<0.000000e+00> : vector<8x32xf32>
    %3 = tpu.matmul %1, %2, %cst {dimension_numbers = #tpu.dot_dimension_numbers<[1], [0], [0], [1], [0, 0, 1, 1], [], []>} : vector<8x32xbf16>, vector<32x32xbf16>, vector<8x32xf32> -> vector<8x32xf32>
    %c0_3 = arith.constant 0 : index
    %c0_4 = arith.constant 0 : index
    %4 = vector.load %arg2[%c0_3, %c0_4] : memref<1x32xf32, #tpu.memory_space<vmem>>, vector<1x32xf32>
    %5 = vector.broadcast %4 : vector<1x32xf32> to vector<8x32xf32>
    %6 = arith.addf %3, %5 : vector<8x32xf32>
    %cst_5 = arith.constant 0.000000e+00 : f32
    %7 = vector.broadcast %cst_5 : f32 to vector<8x32xf32>
    %8 = arith.maximumf %6, %7 : vector<8x32xf32>
    %9 = arith.truncf %8 : vector<8x32xf32> to vector<8x32xbf16>
    %c0_6 = arith.constant 0 : index
    %c0_7 = arith.constant 0 : index
    %10 = vector.load %arg3[%c0_6, %c0_7] : memref<32x32xbf16, #tpu.memory_space<vmem>>, vector<32x32xbf16>
    %cst_8 = arith.constant dense<0.000000e+00> : vector<8x32xf32>
    %11 = tpu.matmul %9, %10, %cst_8 {dimension_numbers = #tpu.dot_dimension_numbers<[1], [0], [0], [1], [0, 0, 1, 1], [], []>} : vector<8x32xbf16>, vector<32x32xbf16>, vector<8x32xf32> -> vector<8x32xf32>
    %c0_9 = arith.constant 0 : index
    %c0_10 = arith.constant 0 : index
    %12 = vector.load %arg4[%c0_9, %c0_10] : memref<1x32xf32, #tpu.memory_space<vmem>>, vector<1x32xf32>
    %13 = vector.broadcast %12 : vector<1x32xf32> to vector<8x32xf32>
    %14 = arith.addf %11, %13 : vector<8x32xf32>
    %cst_11 = arith.constant 0.000000e+00 : f32
    %15 = vector.broadcast %cst_11 : f32 to vector<8x32xf32>
    %16 = arith.maximumf %14, %15 : vector<8x32xf32>
    %17 = arith.truncf %16 : vector<8x32xf32> to vector<8x32xbf16>
    %c0_12 = arith.constant 0 : index
    %c0_13 = arith.constant 0 : index
    %18 = vector.load %arg5[%c0_12, %c0_13] : memref<32x32xbf16, #tpu.memory_space<vmem>>, vector<32x32xbf16>
    %cst_14 = arith.constant dense<0.000000e+00> : vector<8x32xf32>
    %19 = tpu.matmul %17, %18, %cst_14 {dimension_numbers = #tpu.dot_dimension_numbers<[1], [0], [0], [1], [0, 0, 1, 1], [], []>} : vector<8x32xbf16>, vector<32x32xbf16>, vector<8x32xf32> -> vector<8x32xf32>
    %c0_15 = arith.constant 0 : index
    %c0_16 = arith.constant 0 : index
    %20 = vector.load %arg6[%c0_15, %c0_16] : memref<1x32xf32, #tpu.memory_space<vmem>>, vector<1x32xf32>
    %21 = vector.broadcast %20 : vector<1x32xf32> to vector<8x32xf32>
    %22 = arith.addf %19, %21 : vector<8x32xf32>
    %23 = arith.truncf %22 : vector<8x32xf32> to vector<8x32xbf16>
    %c0_17 = arith.constant 0 : index
    %c0_18 = arith.constant 0 : index
    %24 = vector.load %arg9[%c0_17, %c0_18] : memref<8x32xbf16, #tpu.memory_space<vmem>>, vector<8x32xbf16>
    tpu.vector_store %arg9[%c0_17, %c0_18], %23 {strides = array<i32>} : memref<8x32xbf16, #tpu.memory_space<vmem>>, vector<8x32xbf16>,
    %c0_19 = arith.constant 0 : index
    %c0_20 = arith.constant 0 : index
    %25 = vector.load %arg7[%c0_19, %c0_20] : memref<32x128xbf16, #tpu.memory_space<vmem>>, vector<32x128xbf16>
    %cst_21 = arith.constant dense<0.000000e+00> : vector<8x128xf32>
    %26 = tpu.matmul %17, %25, %cst_21 {dimension_numbers = #tpu.dot_dimension_numbers<[1], [0], [0], [1], [0, 0, 1, 1], [], []>} : vector<8x32xbf16>, vector<32x128xbf16>, vector<8x128xf32> -> vector<8x128xf32>
    %c0_22 = arith.constant 0 : index
    %c0_23 = arith.constant 0 : index
    %27 = vector.load %arg8[%c0_22, %c0_23] : memref<1x128xf32, #tpu.memory_space<vmem>>, vector<1x128xf32>
    %28 = vector.broadcast %27 : vector<1x128xf32> to vector<8x128xf32>
    %29 = arith.addf %26, %28 : vector<8x128xf32>
    %c0_24 = arith.constant 0 : index
    %c0_25 = arith.constant 0 : index
    %30 = vector.load %arg10[%c0_24, %c0_25] : memref<8x128xf32, #tpu.memory_space<vmem>>, vector<8x128xf32>
    tpu.vector_store %arg10[%c0_24, %c0_25], %29 {strides = array<i32>} : memref<8x128xf32, #tpu.memory_space<vmem>>, vector<8x128xf32>,
    return
  }
}

</mosaic_0001>

<llo_original>
// kernel: tpu_custom_call.1
$region0: #{tpu_custom_call.1}
  #allocation0 [shape = 'u32[]', space=smem, size = 0x4, offset = 0x4, fixed_abs, tag = 'smem constant byte address 0x4 - core index']
  #allocation1 [shape = 'u32[144,128]{1,0:T(1,128)}', space=vmem, size = 0x12000, scoped, tag = 'internal scratch']
  %s0 = inlined_call_operand.hbm [shape: f32[8,32], index: 0, kind: input, shape index: {}]
  %s1 = inlined_call_operand.hbm [shape: bf16[32,32], index: 1, kind: input, shape index: {}]
  %s2 = inlined_call_operand.vmem [shape: f32[1,32], index: 2, kind: input, shape index: {}]
  %s3 = inlined_call_operand.hbm [shape: bf16[32,32], index: 3, kind: input, shape index: {}]
  %s4 = inlined_call_operand.vmem [shape: f32[1,32], index: 4, kind: input, shape index: {}]
  %s5 = inlined_call_operand.hbm [shape: bf16[32,32], index: 5, kind: input, shape index: {}]
  %s6 = inlined_call_operand.vmem [shape: f32[1,32], index: 6, kind: input, shape index: {}]
  %s7 = inlined_call_operand.hbm [shape: bf16[32,128], index: 7, kind: input, shape index: {}]
  %s8 = inlined_call_operand.vmem [shape: f32[1,128], index: 8, kind: input, shape index: {}]
  %s9 = inlined_call_operand.hbm [shape: bf16[8,32], index: 9, kind: output, shape index: {0}]
  %s10 = inlined_call_operand.hbm [shape: f32[8,128], index: 10, kind: output, shape index: {1}]
  %11 = xla_tuple %s9, %s10
  %s12 = sld [smem:[#allocation0]]
  $region74: #{tpu_custom_call.1} parent=0
    _
  %s14 = ssub.s32 1, %s12
  %s15 = scalar_select 0, %s14, %s12
  $region1: #{tpu_custom_call.1} parent=0
    #allocation2 [shape = 'u8[4096]{0}', space=vmem, size = 0x1000, scoped, tag = 'input window, operand 0, single buffered']
    #allocation3 [shape = 's32[1]{0}', space=sflag, size = 0x4, scoped, tag = 'scoped memory for tpu_custom_call.1']
    #allocation4 [shape = 's32[1]{0}', space=sflag, size = 0x4, scoped, tag = 'scoped memory for tpu_custom_call.1']
    #allocation5 [shape = 'u8[8192]{0}', space=vmem, size = 0x2000, scoped, tag = 'input window, operand 1, single buffered']
    #allocation6 [shape = 's32[1]{0}', space=sflag, size = 0x4, scoped, tag = 'scoped memory for tpu_custom_call.1']
    #allocation7 [shape = 'u8[8192]{0}', space=vmem, size = 0x2000, scoped, tag = 'input window, operand 3, single buffered']
    #allocation8 [shape = 'u8[8192]{0}', space=vmem, size = 0x2000, scoped, tag = 'input window, operand 5, single buffered']
    #allocation9 [shape = 's32[1]{0}', space=sflag, size = 0x4, scoped, tag = 'scoped memory for tpu_custom_call.1']
    #allocation10 [shape = 'u8[8192]{0}', space=vmem, size = 0x2000, scoped, tag = 'input window, operand 7, single buffered']
    #allocation11 [shape = 'u8[2048]{0}', space=vmem, size = 0x800, scoped, tag = 'output window, operand 0, single buffered']
    #allocation12 [shape = 'u8[4096]{0}', space=vmem, size = 0x1000, scoped, tag = 'output window, operand 1, single buffered']
    #allocation13 [shape = 's32[1]{0}', space=sflag, size = 0x4, scoped, tag = 'scoped memory for tpu_custom_call.1']
    %16 = vsyncpa [#allocation3], 0
    %17 = vsyncpa [#allocation6], 0
    %18 = vsyncpa [#allocation9], 0
    %19 = vsyncpa [#allocation4], 0
    %20 = vsyncpa [#allocation13], 0
    // Predicated region
    $region2: #{tpu_custom_call.1} parent=1 // pred_check
      _
    $region3: #{tpu_custom_call.1} parent=1 // pred_check_branch
      %22 = sbr.rel (0) target = $region5
    $region4: #{tpu_custom_call.1} parent=1 // pred_region
      %s24 = ssub.s32 128, 128
      %25 = vsyncadd [#allocation3], %s24
      %s27 = sshll.u32 [#allocation2], 4
      %s28 = int_to_ptr.vmem [resolvable:$true] %s27
      %30 = dma.hbm_to_vmem [thread:$0]  %s0, 128, %s28, [#allocation3]
    $region5: #{tpu_custom_call.1} parent=1 // pred_fallthru
      _
    // Predicated region
    $region6: #{tpu_custom_call.1} parent=1 // pred_check
      _
    $region7: #{tpu_custom_call.1} parent=1 // pred_check_branch
      %32 = sbr.rel (0) target = $region9
    $region8: #{tpu_custom_call.1} parent=1 // pred_region
      %s34 = ssub.s32 256, 256
      %35 = vsyncadd [#allocation6], %s34
      %s36 = sshll.u32 [#allocation5], 4
      %s37 = int_to_ptr.vmem [resolvable:$true] %s36
      %42 = dma.hbm_to_vmem [thread:$0]  %s1, 256, %s37, [#allocation6], 64, 64, 4
    $region9: #{tpu_custom_call.1} parent=1 // pred_fallthru
      _
    // Predicated region
    $region10: #{tpu_custom_call.1} parent=1 // pred_check
      _
    $region11: #{tpu_custom_call.1} parent=1 // pred_check_branch
      %44 = sbr.rel (0) target = $region13
    $region12: #{tpu_custom_call.1} parent=1 // pred_region
      _
    $region13: #{tpu_custom_call.1} parent=1 // pred_fallthru
      _
    // Predicated region
    $region14: #{tpu_custom_call.1} parent=1 // pred_check
      _
    $region15: #{tpu_custom_call.1} parent=1 // pred_check_branch
      %46 = sbr.rel (0) target = $region17
    $region16: #{tpu_custom_call.1} parent=1 // pred_region
      %s48 = ssub.s32 256, 256
      %49 = vsyncadd [#allocation6], %s48
      %s50 = sshll.u32 [#allocation7], 4
      %s51 = int_to_ptr.vmem [resolvable:$true] %s50
      %56 = dma.hbm_to_vmem [thread:$0]  %s3, 256, %s51, [#allocation6], 64, 64, 4
    $region17: #{tpu_custom_call.1} parent=1 // pred_fallthru
      _
    // Predicated region
    $region18: #{tpu_custom_call.1} parent=1 // pred_check
      _
    $region19: #{tpu_custom_call.1} parent=1 // pred_check_branch
      %58 = sbr.rel (0) target = $region21
    $region20: #{tpu_custom_call.1} parent=1 // pred_region
      _
    $region21: #{tpu_custom_call.1} parent=1 // pred_fallthru
      _
    // Predicated region
    $region22: #{tpu_custom_call.1} parent=1 // pred_check
      _
    $region23: #{tpu_custom_call.1} parent=1 // pred_check_branch
      %60 = sbr.rel (0) target = $region25
    $region24: #{tpu_custom_call.1} parent=1 // pred_region
      %s62 = ssub.s32 256, 256
      %63 = vsyncadd [#allocation9], %s62
      %s64 = sshll.u32 [#allocation8], 4
      %s65 = int_to_ptr.vmem [resolvable:$true] %s64
      %70 = dma.hbm_to_vmem [thread:$0]  %s5, 256, %s65, [#allocation9], 64, 64, 4
    $region25: #{tpu_custom_call.1} parent=1 // pred_fallthru
      _
    // Predicated region
    $region26: #{tpu_custom_call.1} parent=1 // pred_check
      _
    $region27: #{tpu_custom_call.1} parent=1 // pred_check_branch
      %72 = sbr.rel (0) target = $region29
    $region28: #{tpu_custom_call.1} parent=1 // pred_region
      _
    $region29: #{tpu_custom_call.1} parent=1 // pred_fallthru
      _
    // Predicated region
    $region30: #{tpu_custom_call.1} parent=1 // pred_check
      _
    $region31: #{tpu_custom_call.1} parent=1 // pred_check_branch
      %74 = sbr.rel (0) target = $region33
    $region32: #{tpu_custom_call.1} parent=1 // pred_region
      %s76 = ssub.s32 256, 256
      %77 = vsyncadd [#allocation9], %s76
      %s78 = sshll.u32 [#allocation10], 4
      %s79 = int_to_ptr.vmem [resolvable:$true] %s78
      %84 = dma.hbm_to_vmem [thread:$0]  %s7, 256, %s79, [#allocation9], 64, 64, 4
    $region33: #{tpu_custom_call.1} parent=1 // pred_fallthru
      _
    // Predicated region
    $region34: #{tpu_custom_call.1} parent=1 // pred_check
      _
    $region35: #{tpu_custom_call.1} parent=1 // pred_check_branch
      %86 = sbr.rel (0) target = $region37
    $region36: #{tpu_custom_call.1} parent=1 // pred_region
      _
    $region37: #{tpu_custom_call.1} parent=1 // pred_fallthru
      _
    // Predicated region
    $region38: #{tpu_custom_call.1} parent=1 // pred_check
      _
    $region39: #{tpu_custom_call.1} parent=1 // pred_check_branch
      %88 = sbr.rel (0) target = $region41
    $region40: #{tpu_custom_call.1} parent=1 // pred_region
      %89 = dma.done [#allocation3], 128
    $region41: #{tpu_custom_call.1} parent=1 // pred_fallthru
      _
    // Predicated region
    $region42: #{tpu_custom_call.1} parent=1 // pred_check
      _
    $region43: #{tpu_custom_call.1} parent=1 // pred_check_branch
      %91 = sbr.rel (0) target = $region45
    $region44: #{tpu_custom_call.1} parent=1 // pred_region
      %92 = dma.done [#allocation6], 256
    $region45: #{tpu_custom_call.1} parent=1 // pred_fallthru
      _
    // Predicated region
    $region46: #{tpu_custom_call.1} parent=1 // pred_check
      _
    $region47: #{tpu_custom_call.1} parent=1 // pred_check_branch
      %94 = sbr.rel (0) target = $region49
    $region48: #{tpu_custom_call.1} parent=1 // pred_region
      %95 = dma.done [#allocation6], 256
    $region49: #{tpu_custom_call.1} parent=1 // pred_fallthru
      _
    // Predicated region
    $region50: #{tpu_custom_call.1} parent=1 // pred_check
      _
    $region51: #{tpu_custom_call.1} parent=1 // pred_check_branch
      %97 = sbr.rel (0) target = $region53
    $region52: #{tpu_custom_call.1} parent=1 // pred_region
      %98 = dma.done [#allocation9], 256
    $region53: #{tpu_custom_call.1} parent=1 // pred_fallthru
      _
    // Predicated region
    $region54: #{tpu_custom_call.1} parent=1 // pred_check
      _
    $region55: #{tpu_custom_call.1} parent=1 // pred_check_branch
      %100 = sbr.rel (0) target = $region57
    $region56: #{tpu_custom_call.1} parent=1 // pred_region
      %101 = dma.done [#allocation9], 256
    $region57: #{tpu_custom_call.1} parent=1 // pred_fallthru
      _
    %v103 = vld [vmem:[#allocation2] sm:$0xff]
    %v104 = vpack.c.bf16 %v103, %v103
    %v105 = vld [vmem:[#allocation5] sm:$0xf]
    %v106 = vld [vmem:[#allocation5 + $0x4] sm:$0xf]
    %v107 = vld [vmem:[#allocation5 + $0x8] sm:$0xf]
    %v108 = vld [vmem:[#allocation5 + $0xc] sm:$0xf]
    %v109 = vld [vmem:[%s2] sm:$0x1]
    %v111 = vlaneseq
    %v112 = vshrl.u32 %v111, 7
    %v113 = vsub.s32 0, %v112
    %v114 = vrot.slane %v109, %v113
    %v120 = vunpack.c.l.b16 %v105
    %v121 = vunpack.c.l.b16 %v106
    %v122 = vunpack.c.l.b16 %v107
    %v123 = vunpack.c.l.b16 %v108
    %v124 = vpack.c.b16 %v121, %v120
    %v125 = vpack.c.b16 %v123, %v122
    %vm128 = vcmask 261120
    %v130 = vsel %vm128, %v104, 0
    %132 = vmatprep.subr.bf16.mxu0 0
    %133 = vmatpush1.bf16.msra.mxu0 0
    %134 = vmatprep.subr.bf16.mxu0 0
    %135 = vmatpush1.bf16.msra.mxu0 0
    %136 = vmatprep.subr.bf16.mxu0 0
    %137 = vmatpush1.bf16.msra.mxu0 0
    %138 = vmatprep.subr.bf16.mxu0 0
    %139 = vmatpush1.bf16.msra.mxu0 0
    %140 = vmatprep.subr.bf16.mxu0 0
    %141 = vmatpush1.bf16.msra.mxu0 0
    %142 = vmatprep.subr.bf16.mxu0 0
    %143 = vmatpush1.bf16.msra.mxu0 0
    %144 = vmatprep.subr.bf16.mxu0 0
    %145 = vmatpush1.bf16.msra.mxu0 %v125
    %146 = vmatprep.subr.bf16.mxu0 0
    %147 = vmatpush1.bf16.msra.mxu0 %v124
    %148 = vmatprep.subr.bf16.mxu0 0
    %149 = vmatpush2.bf16.msra.mxu0 0
    %150 = vmatprep.subr.bf16.mxu0 0
    %151 = vmatpush2.bf16.msra.mxu0 0
    %152 = vmatprep.subr.bf16.mxu0 0
    %153 = vmatpush2.bf16.msra.mxu0 0
    %154 = vmatprep.subr.bf16.mxu0 0
    %155 = vmatpush2.bf16.msra.mxu0 0
    %156 = vmatprep.subr.bf16.mxu0 0
    %157 = vmatpush2.bf16.msra.mxu0 0
    %158 = vmatprep.subr.bf16.mxu0 0
    %159 = vmatpush2.bf16.msra.mxu0 0
    %160 = vmatprep.subr.bf16.mxu0 0
    %161 = vmatpush2.bf16.msra.mxu0 0
    %162 = vmatprep.subr.bf16.mxu0 0
    %163 = vmatpush2.bf16.msra.mxu0 0
    %164 = vmatprep.mubr.bf16.mxu0 0
    %165 = vmatmul.mubr.bf16.gmra.mxu0 %v130
    %v166 = vpop.f32.mrf.mxu0
    %v167 = vadd.f32 %v114, %v166
    %v168 = vpop.f32.mrf.mxu0
    %v169 = vpop.f32.mrf.mxu0
    %v170 = vpop.f32.mrf.mxu0
    %171 = vdwg.mxu0
    %v172 = vmax.f32 %v167, 0.0
    %v173 = vpack.c.bf16 %v172, %v172
    %v174 = vld [vmem:[#allocation7] sm:$0xf]
    %v175 = vld [vmem:[#allocation7 + $0x4] sm:$0xf]
    %v176 = vld [vmem:[#allocation7 + $0x8] sm:$0xf]
    %v177 = vld [vmem:[#allocation7 + $0xc] sm:$0xf]
    %v178 = vld [vmem:[%s4] sm:$0x1]
    %v180 = vlaneseq
    %v181 = vshrl.u32 %v180, 7
    %v182 = vsub.s32 0, %v181
    %v183 = vrot.slane %v178, %v182
    %v189 = vunpack.c.l.b16 %v174
    %v190 = vunpack.c.l.b16 %v175
    %v191 = vunpack.c.l.b16 %v176
    %v192 = vunpack.c.l.b16 %v177
    %v193 = vpack.c.b16 %v190, %v189
    %v194 = vpack.c.b16 %v192, %v191
    %v198 = vsel %vm128, %v173, 0
    %200 = vmatprep.subr.bf16.mxu0 0
    %201 = vmatpush1.bf16.msra.mxu0 0
    %202 = vmatprep.subr.bf16.mxu0 0
    %203 = vmatpush1.bf16.msra.mxu0 0
    %204 = vmatprep.subr.bf16.mxu0 0
    %205 = vmatpush1.bf16.msra.mxu0 0
    %206 = vmatprep.subr.bf16.mxu0 0
    %207 = vmatpush1.bf16.msra.mxu0 0
    %208 = vmatprep.subr.bf16.mxu0 0
    %209 = vmatpush1.bf16.msra.mxu0 0
    %210 = vmatprep.subr.bf16.mxu0 0
    %211 = vmatpush1.bf16.msra.mxu0 0
    %212 = vmatprep.subr.bf16.mxu0 0
    %213 = vmatpush1.bf16.msra.mxu0 %v194
    %214 = vmatprep.subr.bf16.mxu0 0
    %215 = vmatpush1.bf16.msra.mxu0 %v193
    %216 = vmatprep.subr.bf16.mxu0 0
    %217 = vmatpush2.bf16.msra.mxu0 0
    %218 = vmatprep.subr.bf16.mxu0 0
    %219 = vmatpush2.bf16.msra.mxu0 0
    %220 = vmatprep.subr.bf16.mxu0 0
    %221 = vmatpush2.bf16.msra.mxu0 0
    %222 = vmatprep.subr.bf16.mxu0 0
    %223 = vmatpush2.bf16.msra.mxu0 0
    %224 = vmatprep.subr.bf16.mxu0 0
    %225 = vmatpush2.bf16.msra.mxu0 0
    %226 = vmatprep.subr.bf16.mxu0 0
    %227 = vmatpush2.bf16.msra.mxu0 0
    %228 = vmatprep.subr.bf16.mxu0 0
    %229 = vmatpush2.bf16.msra.mxu0 0
    %230 = vmatprep.subr.bf16.mxu0 0
    %231 = vmatpush2.bf16.msra.mxu0 0
    %232 = vmatprep.mubr.bf16.mxu0 0
    %233 = vmatmul.mubr.bf16.gmra.mxu0 %v198
    %v234 = vpop.f32.mrf.mxu0
    %v235 = vadd.f32 %v183, %v234
    %v236 = vpop.f32.mrf.mxu0
    %v237 = vpop.f32.mrf.mxu0
    %v238 = vpop.f32.mrf.mxu0
    %239 = vdwg.mxu0
    %v240 = vmax.f32 %v235, 0.0
    %v241 = vpack.c.bf16 %v240, %v240
    %v242 = vld [vmem:[#allocation8] sm:$0xf]
    %v243 = vld [vmem:[#allocation8 + $0x4] sm:$0xf]
    %v244 = vld [vmem:[#allocation8 + $0x8] sm:$0xf]
    %v245 = vld [vmem:[#allocation8 + $0xc] sm:$0xf]
    %v246 = vld [vmem:[%s6] sm:$0x1]
    %v248 = vlaneseq
    %v249 = vshrl.u32 %v248, 7
    %v250 = vsub.s32 0, %v249
    %v251 = vrot.slane %v246, %v250
    %v257 = vunpack.c.l.b16 %v242
    %v258 = vunpack.c.l.b16 %v243
    %v259 = vunpack.c.l.b16 %v244
    %v260 = vunpack.c.l.b16 %v245
    %v261 = vpack.c.b16 %v258, %v257
    %v262 = vpack.c.b16 %v260, %v259
    %v266 = vsel %vm128, %v241, 0
    %268 = vmatprep.subr.bf16.mxu0 0
    %269 = vmatpush1.bf16.msra.mxu0 0
    %270 = vmatprep.subr.bf16.mxu0 0
    %271 = vmatpush1.bf16.msra.mxu0 0
    %272 = vmatprep.subr.bf16.mxu0 0
    %273 = vmatpush1.bf16.msra.mxu0 0
    %274 = vmatprep.subr.bf16.mxu0 0
    %275 = vmatpush1.bf16.msra.mxu0 0
    %276 = vmatprep.subr.bf16.mxu0 0
    %277 = vmatpush1.bf16.msra.mxu0 0
    %278 = vmatprep.subr.bf16.mxu0 0
    %279 = vmatpush1.bf16.msra.mxu0 0
    %280 = vmatprep.subr.bf16.mxu0 0
    %281 = vmatpush1.bf16.msra.mxu0 %v262
    %282 = vmatprep.subr.bf16.mxu0 0
    %283 = vmatpush1.bf16.msra.mxu0 %v261
    %284 = vmatprep.subr.bf16.mxu0 0
    %285 = vmatpush2.bf16.msra.mxu0 0
    %286 = vmatprep.subr.bf16.mxu0 0
    %287 = vmatpush2.bf16.msra.mxu0 0
    %288 = vmatprep.subr.bf16.mxu0 0
    %289 = vmatpush2.bf16.msra.mxu0 0
    %290 = vmatprep.subr.bf16.mxu0 0
    %291 = vmatpush2.bf16.msra.mxu0 0
    %292 = vmatprep.subr.bf16.mxu0 0
    %293 = vmatpush2.bf16.msra.mxu0 0
    %294 = vmatprep.subr.bf16.mxu0 0
    %295 = vmatpush2.bf16.msra.mxu0 0
    %296 = vmatprep.subr.bf16.mxu0 0
    %297 = vmatpush2.bf16.msra.mxu0 0
    %298 = vmatprep.subr.bf16.mxu0 0
    %299 = vmatpush2.bf16.msra.mxu0 0
    %300 = vmatprep.mubr.bf16.mxu0 0
    %301 = vmatmul.mubr.bf16.gmra.mxu0 %v266
    %v302 = vpop.f32.mrf.mxu0
    %v303 = vadd.f32 %v251, %v302
    %v304 = vpop.f32.mrf.mxu0
    %v305 = vpop.f32.mrf.mxu0
    %v306 = vpop.f32.mrf.mxu0
    %307 = vdwg.mxu0
    %v308 = vpack.c.bf16 %v303, %v303
    %vm309 = vcmask 257024
    %310 = vst.msk [vmem:[#allocation11] sm:$0xf] %vm309, %v308
    %v311 = vld [vmem:[#allocation10] sm:$0xf]
    %v312 = vld [vmem:[#allocation10 + $0x4] sm:$0xf]
    %v313 = vld [vmem:[#allocation10 + $0x8] sm:$0xf]
    %v314 = vld [vmem:[#allocation10 + $0xc] sm:$0xf]
    %v315 = vld [vmem:[%s8] sm:$0x1]
    %v317 = vlaneseq
    %v318 = vshrl.u32 %v317, 7
    %v319 = vsub.s32 0, %v318
    %v320 = vrot.slane %v315, %v319
    %v326 = vunpack.c.l.b16 %v311
    %v327 = vunpack.c.l.b16 %v312
    %v328 = vunpack.c.l.b16 %v313
    %v329 = vunpack.c.l.b16 %v314
    %v330 = vpack.c.b16 %v327, %v326
    %v331 = vpack.c.b16 %v329, %v328
    %334 = vmatprep.subr.bf16.mxu0 0
    %335 = vmatpush1.bf16.msra.mxu0 0
    %336 = vmatprep.subr.bf16.mxu0 0
    %337 = vmatpush1.bf16.msra.mxu0 0
    %338 = vmatprep.subr.bf16.mxu0 0
    %339 = vmatpush1.bf16.msra.mxu0 0
    %340 = vmatprep.subr.bf16.mxu0 0
    %341 = vmatpush1.bf16.msra.mxu0 0
    %342 = vmatprep.subr.bf16.mxu0 0
    %343 = vmatpush1.bf16.msra.mxu0 0
    %344 = vmatprep.subr.bf16.mxu0 0
    %345 = vmatpush1.bf16.msra.mxu0 0
    %346 = vmatprep.subr.bf16.mxu0 0
    %347 = vmatpush1.bf16.msra.mxu0 %v331
    %348 = vmatprep.subr.bf16.mxu0 0
    %349 = vmatpush1.bf16.msra.mxu0 %v330
    %350 = vmatprep.subr.bf16.mxu0 0
    %351 = vmatpush2.bf16.msra.mxu0 0
    %352 = vmatprep.subr.bf16.mxu0 0
    %353 = vmatpush2.bf16.msra.mxu0 0
    %354 = vmatprep.subr.bf16.mxu0 0
    %355 = vmatpush2.bf16.msra.mxu0 0
    %356 = vmatprep.subr.bf16.mxu0 0
    %357 = vmatpush2.bf16.msra.mxu0 0
    %358 = vmatprep.subr.bf16.mxu0 0
    %359 = vmatpush2.bf16.msra.mxu0 0
    %360 = vmatprep.subr.bf16.mxu0 0
    %361 = vmatpush2.bf16.msra.mxu0 0
    %362 = vmatprep.subr.bf16.mxu0 0
    %363 = vmatpush2.bf16.msra.mxu0 0
    %364 = vmatprep.subr.bf16.mxu0 0
    %365 = vmatpush2.bf16.msra.mxu0 0
    %366 = vmatprep.mubr.bf16.mxu0 0
    %367 = vmatmul.mubr.bf16.gmra.mxu0 %v266
    %v368 = vpop.f32.mrf.mxu0
    %v369 = vadd.f32 %v320, %v368
    %v370 = vpop.f32.mrf.mxu0
    %v371 = vpop.f32.mrf.mxu0
    %v372 = vpop.f32.mrf.mxu0
    %373 = vdwg.mxu0
    %374 = vst [vmem:[#allocation12] sm:$0xff] %v369
    // Predicated region
    $region58: #{tpu_custom_call.1} parent=1 // pred_check
      _
    $region59: #{tpu_custom_call.1} parent=1 // pred_check_branch
      %376 = sbr.rel (0) target = $region61
    $region60: #{tpu_custom_call.1} parent=1 // pred_region
      %s378 = ssub.s32 64, 64
      %379 = vsyncadd [#allocation4], %s378
      %s381 = sshll.u32 [#allocation11], 4
      %s382 = int_to_ptr.vmem [resolvable:$true] %s381
      %384 = dma.vmem_to_hbm [thread:$0]  %s382, 64, %s9, [#allocation4]
    $region61: #{tpu_custom_call.1} parent=1 // pred_fallthru
      _
    // Predicated region
    $region62: #{tpu_custom_call.1} parent=1 // pred_check
      _
    $region63: #{tpu_custom_call.1} parent=1 // pred_check_branch
      %386 = sbr.rel (0) target = $region65
    $region64: #{tpu_custom_call.1} parent=1 // pred_region
      %s388 = ssub.s32 128, 128
      %389 = vsyncadd [#allocation13], %s388
      %s391 = sshll.u32 [#allocation12], 4
      %s392 = int_to_ptr.vmem [resolvable:$true] %s391
      %394 = dma.vmem_to_hbm [thread:$0]  %s392, 128, %s10, [#allocation13]
    $region65: #{tpu_custom_call.1} parent=1 // pred_fallthru
      _
    // Predicated region
    $region66: #{tpu_custom_call.1} parent=1 // pred_check
      _
    $region67: #{tpu_custom_call.1} parent=1 // pred_check_branch
      %396 = sbr.rel (0) target = $region69
    $region68: #{tpu_custom_call.1} parent=1 // pred_region
      %397 = dma.done [#allocation4], 64
    $region69: #{tpu_custom_call.1} parent=1 // pred_fallthru
      _
    // Predicated region
    $region70: #{tpu_custom_call.1} parent=1 // pred_check
      _
    $region71: #{tpu_custom_call.1} parent=1 // pred_check_branch
      %399 = sbr.rel (0) target = $region73
    $region72: #{tpu_custom_call.1} parent=1 // pred_region
      %400 = dma.done [#allocation13], 128
    $region73: #{tpu_custom_call.1} parent=1 // pred_fallthru
      _
    %401 = vsyncpa [#allocation3], 1
    %402 = vsyncpa [#allocation6], 1
    %403 = vsyncpa [#allocation9], 1
    %404 = vsyncpa [#allocation4], 1
    %405 = vsyncpa [#allocation13], 1

</llo_original>
